<compile_context>
chip_gen: v5e
topology: v5e:2x2
jax: 0.10.0
libtpu: 0.0.40
codegen_flags: <defaults>
</compile_context>

<pallas_src>
import functools

import jax
import jax.numpy as jnp
from jax.experimental import pallas as pl
from jax.experimental.pallas import tpu as pltpu


# Lane shifts use the XLU roll when lowering through Mosaic on a real TPU;
# otherwise (CPU interpret mode) fall back to an identical slice+concat roll.
_ON_TPU = any(d.platform == "tpu" for d in jax.devices())


def _lane_shift(a, shift, size):
    """jnp.roll(a, shift, axis=1) for a 2-D (C, size) value with a static shift."""
    shift = shift % size
    if shift == 0:
        return a
    if (shift % 128 == 0 and size % 128 == 0) or not _ON_TPU:
        # 128-aligned split: pure vreg moves, no lane rotation needed.  Also the
        # safe fallback when not lowering through Mosaic (interpret mode).
        return jnp.concatenate([a[:, size - shift:], a[:, :size - shift]], axis=1)
    return pltpu.roll(a, shift=shift, axis=1)          # XLU lane rotation


def _corr_kernel_single(x_ref, y_ref, m_ref, o_ref, *, K, stride, W, HW, pad):
    """grid=(B,): the whole channel extent is resident -> no accumulator scratch.

    x_ref, y_ref : (1, C, HW)   full-channel block of x / y (spatial flattened)
    m_ref        : (K*K, HW)    boundary-validity mask pre-scaled by 1/C (f32)
    o_ref        : (1, K*K, HW) correlation volume for this batch element
    """
    x = x_ref[0]                                       # (C, HW)
    y = y_ref[0]                                       # (C, HW)
    for dj in range(K):
        dw = dj * stride - pad
        y_dj = _lane_shift(y, -dw, HW)                 # K-1 column rolls, shared
        for di in range(K):
            dh = di * stride - pad
            y_k = _lane_shift(y_dj, -(dh * W), HW)     # row shift (cheap if W%128==0)
            idx = di * K + dj
            row = jnp.sum(x * y_k, axis=0, dtype=jnp.float32, keepdims=True)
            o_ref[0, idx:idx + 1, :] = (
                row * m_ref[idx:idx + 1, :]).astype(o_ref.dtype)


def _corr_kernel_chunked(x_ref, y_ref, m_ref, o_ref, acc_ref, *, K, stride, W, HW, pad):
    """grid=(B, n_c): channels are the innermost ("arbitrary") reduction axis.

    x_ref, y_ref : (1, Cc, HW)  channel chunk of x / y
    m_ref        : (K*K, HW)    boundary mask pre-scaled by 1/C (f32)
    o_ref        : (1, K*K, HW)
    acc_ref      : (K*K, HW)    f32 accumulator, resident across the C axis
    """
    c_step = pl.program_id(1)

    @pl.when(c_step == 0)
    def _init():
        acc_ref[...] = jnp.zeros_like(acc_ref)

    x = x_ref[0]                                       # (Cc, HW)
    y = y_ref[0]                                       # (Cc, HW)
    for dj in range(K):
        dw = dj * stride - pad
        y_dj = _lane_shift(y, -dw, HW)
        for di in range(K):
            dh = di * stride - pad
            y_k = _lane_shift(y_dj, -(dh * W), HW)
            idx = di * K + dj
            # Accumulate straight into the static slice: bounds live ranges to
            # one (1, HW) f32 row instead of K^2 rows + a concatenate.
            acc_ref[idx:idx + 1, :] += jnp.sum(
                x * y_k, axis=0, dtype=jnp.float32, keepdims=True)

    @pl.when(c_step == pl.num_programs(1) - 1)
    def _finalize():
        o_ref[0] = (acc_ref[...] * m_ref[...]).astype(o_ref.dtype)


def _vmem_capacity_bytes():
    """Physical VMEM per TensorCore (128 MiB v5e/v6e, 64 MiB v7x)."""
    try:
        return int(pltpu.get_tpu_info().vmem_capacity_bytes)
    except Exception:
        return 64 * 1024 * 1024        # conservative fallback (v7x per-TC VMEM)


def _pick_c_chunk(C, HW, itemsize, input_budget_bytes):
    """Channel chunk Cc and step count n_c.

    Picks the largest dtype-aware sublane multiple such that the 4 resident
    double-buffered (Cc, HW) x/y blocks stay inside `input_budget_bytes`.
    Awkward C is handled with cdiv + zero-padded tail channels (no divisor
    search, no silent budget overrun).
    """
    sublane = max(8, 32 // itemsize)                   # 8 f32 / 16 bf16 / 32 int8
    max_cc = input_budget_bytes // (4 * HW * itemsize)
    if C <= max_cc:
        return C, 1
    # TODO(synk): when max_cc < sublane (very large H*W), tile the HW lane axis
    # in 128-multiples (halo'd H bands) instead of shrinking Cc further.
    cc = max(sublane, (max_cc // sublane) * sublane)
    n_c = -(-C // cc)
    return cc, n_c


def _boundary_mask(K, stride, H, W, pad, C):
    """(K*K, H*W) f32 zero-padding validity mask, pre-multiplied by 1/C."""
    idx = jnp.arange(K * K)
    dh = (idx // K) * stride - pad                     # (K2,)
    dw = (idx % K) * stride - pad
    h = jnp.arange(H)[None, :] + dh[:, None]           # (K2, H)
    w = jnp.arange(W)[None, :] + dw[:, None]           # (K2, W)
    valid = ((h >= 0) & (h < H))[:, :, None] & ((w >= 0) & (w < W))[:, None, :]
    return (valid.astype(jnp.float32) * (1.0 / C)).reshape(K * K, H * W)


def corr_layer(x, y, kernel_size, stride):
    """Pallas implementation of CorrLayer.forward(x, y)."""
    assert x.shape == y.shape, "x and y must have the same shape"
    B, C, H, W = x.shape
    K = kernel_size
    pad = (K // 2) * stride
    K2 = K * K
    HW = H * W
    itemsize = jnp.dtype(x.dtype).itemsize

    # Generation-aware VMEM budgeting: chunk budget and vmem_limit both derive
    # from the physical per-core VMEM.
    cap = _vmem_capacity_bytes()
    input_budget = (cap * 5) // 8                      # for the 4 resident x/y blocks
    Cc, n_c = _pick_c_chunk(C, HW, itemsize, input_budget)

    # Flatten spatial dims -> lane-dense last axis (contiguous reshape).
    xf = x.reshape(B, C, HW)
    yf = y.reshape(B, C, HW)

    # Zero-pad tail channels if C is not a multiple of Cc (padded products are
    # zero; the mean still divides by the true C via the pre-scaled mask).
    C_pad = Cc * n_c
    if C_pad != C:
        xf = jnp.pad(xf, ((0, 0), (0, C_pad - C), (0, 0)))
        yf = jnp.pad(yf, ((0, 0), (0, C_pad - C), (0, 0)))

    mask = _boundary_mask(K, stride, H, W, pad, C)     # (K2, HW) f32

    block_in = Cc * HW * itemsize
    block_out = K2 * HW * itemsize
    mask_bytes = K2 * HW * 4
    needed = 4 * block_in + 2 * block_out + 2 * mask_bytes + K2 * HW * 4
    # Cap well below physical VMEM (v7x: <= 56 of 64 MiB) for Mosaic-internal
    # scratch headroom; never request less than the blocks actually need.
    vmem_limit = int(min((cap * 7) // 8, max(needed + (8 << 20), 32 << 20)))

    if n_c == 1:
        kernel = functools.partial(_corr_kernel_single,
                                   K=K, stride=stride, W=W, HW=HW, pad=pad)
        out_flat = pl.pallas_call(
            kernel,
            out_shape=jax.ShapeDtypeStruct((B, K2, HW), x.dtype),
            grid=(B,),
            in_specs=[
                pl.BlockSpec((1, Cc, HW), lambda b: (b, 0, 0)),
                pl.BlockSpec((1, Cc, HW), lambda b: (b, 0, 0)),
                pl.BlockSpec((K2, HW), lambda b: (0, 0)),
            ],
            out_specs=pl.BlockSpec((1, K2, HW), lambda b: (b, 0, 0)),
            compiler_params=pltpu.CompilerParams(
                dimension_semantics=("parallel",),
                vmem_limit_bytes=vmem_limit,
            ),
        )(xf, yf, mask)
    else:
        kernel = functools.partial(_corr_kernel_chunked,
                                   K=K, stride=stride, W=W, HW=HW, pad=pad)
        out_flat = pl.pallas_call(
            kernel,
            out_shape=jax.ShapeDtypeStruct((B, K2, HW), x.dtype),
            grid=(B, n_c),                             # channel reduction innermost
            in_specs=[
                pl.BlockSpec((1, Cc, HW), lambda b, c: (b, c, 0)),
                pl.BlockSpec((1, Cc, HW), lambda b, c: (b, c, 0)),
                pl.BlockSpec((K2, HW), lambda b, c: (0, 0)),
            ],
            out_specs=pl.BlockSpec((1, K2, HW), lambda b, c: (b, 0, 0)),
            scratch_shapes=[pltpu.VMEM((K2, HW), jnp.float32)],
            compiler_params=pltpu.CompilerParams(
                dimension_semantics=("parallel", "arbitrary"),
                vmem_limit_bytes=vmem_limit,
            ),
        )(xf, yf, mask)

    # TODO(synk): for B == 1 on v7x megacore, add a spatial "parallel" grid axis
    # (halo'd H bands for y) so the second TensorCore gets work.
    # TODO(synk): on v5e, hoist a bf16->f32 upcast of x out of the K^2 loop and
    # consider the MXU ones-vector channel reduce where VALU is the measured
    # binder; add pipeline_mode=pl.Buffered(3) on x/y if xprof shows exposed DMA.
    return out_flat.reshape(B, K2, H, W)


def corr_layer_ref(x, y, kernel_size, stride):
    """Pure-JAX reference for correctness checking."""
    B, C, H, W = x.shape
    K = kernel_size
    pad = (K // 2) * stride
    y_pad = jnp.pad(y, ((0, 0), (0, 0), (pad, pad), (pad, pad)))
    outs = []
    for di in range(K):
        for dj in range(K):
            y_win = y_pad[:, :, di * stride:di * stride + H,
                                dj * stride:dj * stride + W]
            outs.append(jnp.mean(x * y_win, axis=1, keepdims=True))
    return jnp.concatenate(outs, axis=1)


if __name__ == "__main__":
    B, C, H, W = 2, 4, 16, 16
    kernel_size, stride = 3, 1

    key = jax.random.PRNGKey(0)
    kx, ky = jax.random.split(key)
    x = jax.random.normal(kx, (B, C, H, W), dtype=jnp.float32)
    y = jax.random.normal(ky, (B, C, H, W), dtype=jnp.float32)

    out = jax.block_until_ready(corr_layer(x, y, kernel_size, stride))

    ref = corr_layer_ref(x, y, kernel_size, stride)
    assert out.shape == (B, kernel_size * kernel_size, H, W), out.shape
    assert jnp.allclose(out, ref, atol=1e-5, rtol=1e-5), "mismatch vs reference"

    print("KERNEL_OK")
</pallas_src>

<mosaic_0001>
module attributes {stable_mosaic.version = 11 : i64} {
  func.func @_corr_kernel_single(%arg0: i32, %arg1: memref<1x4x256xf32, #tpu.memory_space<vmem>>, %arg2: memref<1x4x256xf32, #tpu.memory_space<vmem>>, %arg3: memref<9x256xf32, #tpu.memory_space<vmem>>, %arg4: memref<1x9x256xf32, #tpu.memory_space<vmem>>) attributes {dimension_semantics = [#tpu.dimension_semantics<parallel>], iteration_bounds = array<i64: 2>, scalar_prefetch = 0 : i64, scratch_operands = 0 : i64, tpu.core_type = #tpu.core_type<tc>, window_params = [{transform_indices = @transform_0, window_bounds = array<i64: 1, 4, 256>}, {transform_indices = @transform_1, window_bounds = array<i64: 1, 4, 256>}, {pipeline_mode = #tpu.pipeline_mode<synchronous>, transform_indices = @transform_2, window_bounds = array<i64: 9, 256>}, {transform_indices = @transform_3, window_bounds = array<i64: 1, 9, 256>}]} {
    %c0 = arith.constant 0 : index
    %c0_0 = arith.constant 0 : index
    %c0_1 = arith.constant 0 : index
    %0 = vector.load %arg1[%c0, %c0_0, %c0_1] : memref<1x4x256xf32, #tpu.memory_space<vmem>>, vector<1x4x256xf32>
    %1 = vector.shape_cast %0 : vector<1x4x256xf32> to vector<4x256xf32>
    %c0_2 = arith.constant 0 : index
    %c0_3 = arith.constant 0 : index
    %c0_4 = arith.constant 0 : index
    %2 = vector.load %arg2[%c0_2, %c0_3, %c0_4] : memref<1x4x256xf32, #tpu.memory_space<vmem>>, vector<1x4x256xf32>
    %3 = vector.shape_cast %2 : vector<1x4x256xf32> to vector<4x256xf32>
    %4 = vector.extract_strided_slice %3 {offsets = [0, 255], sizes = [4, 1], strides = [1, 1]} : vector<4x256xf32> to vector<4x1xf32>
    %5 = vector.extract_strided_slice %3 {offsets = [0, 0], sizes = [4, 255], strides = [1, 1]} : vector<4x256xf32> to vector<4x255xf32>
    %6 = tpu.concatenate %4, %5 in 1 : vector<4x1xf32>, vector<4x255xf32> -> vector<4x256xf32>
    %7 = vector.extract_strided_slice %6 {offsets = [0, 240], sizes = [4, 16], strides = [1, 1]} : vector<4x256xf32> to vector<4x16xf32>
    %8 = vector.extract_strided_slice %6 {offsets = [0, 0], sizes = [4, 240], strides = [1, 1]} : vector<4x256xf32> to vector<4x240xf32>
    %9 = tpu.concatenate %7, %8 in 1 : vector<4x16xf32>, vector<4x240xf32> -> vector<4x256xf32>
    %10 = arith.mulf %1, %9 : vector<4x256xf32>
    %cst = arith.constant dense<0.000000e+00> : vector<256xf32>
    %11 = vector.multi_reduction <add>, %10, %cst [0] : vector<4x256xf32> to vector<256xf32>
    %12 = vector.shape_cast %11 : vector<256xf32> to vector<1x256xf32>
    %c0_5 = arith.constant 0 : index
    %c0_6 = arith.constant 0 : index
    %13 = vector.load %arg3[%c0_5, %c0_6] : memref<9x256xf32, #tpu.memory_space<vmem>>, vector<1x256xf32>
    %14 = arith.mulf %12, %13 : vector<1x256xf32>
    %c0_7 = arith.constant 0 : index
    %c0_8 = arith.constant 0 : index
    %c0_9 = arith.constant 0 : index
    %15 = vector.load %arg4[%c0_7, %c0_8, %c0_9] : memref<1x9x256xf32, #tpu.memory_space<vmem>>, vector<1x1x256xf32>
    %16 = vector.shape_cast %15 : vector<1x1x256xf32> to vector<1x256xf32>
    %17 = vector.shape_cast %14 : vector<1x256xf32> to vector<1x1x256xf32>
    tpu.vector_store %arg4[%c0_7, %c0_8, %c0_9], %17 {strides = array<i32>} : memref<1x9x256xf32, #tpu.memory_space<vmem>>, vector<1x1x256xf32>,
    %18 = arith.mulf %1, %6 : vector<4x256xf32>
    %cst_10 = arith.constant dense<0.000000e+00> : vector<256xf32>
    %19 = vector.multi_reduction <add>, %18, %cst_10 [0] : vector<4x256xf32> to vector<256xf32>
    %20 = vector.shape_cast %19 : vector<256xf32> to vector<1x256xf32>
    %c3 = arith.constant 3 : index
    %c0_11 = arith.constant 0 : index
    %21 = vector.load %arg3[%c3, %c0_11] : memref<9x256xf32, #tpu.memory_space<vmem>>, vector<1x256xf32>
    %22 = arith.mulf %20, %21 : vector<1x256xf32>
    %c0_12 = arith.constant 0 : index
    %c3_13 = arith.constant 3 : index
    %c0_14 = arith.constant 0 : index
    %23 = vector.load %arg4[%c0_12, %c3_13, %c0_14] : memref<1x9x256xf32, #tpu.memory_space<vmem>>, vector<1x1x256xf32>
    %24 = vector.shape_cast %23 : vector<1x1x256xf32> to vector<1x256xf32>
    %25 = vector.shape_cast %22 : vector<1x256xf32> to vector<1x1x256xf32>
    tpu.vector_store %arg4[%c0_12, %c3_13, %c0_14], %25 {strides = array<i32>} : memref<1x9x256xf32, #tpu.memory_space<vmem>>, vector<1x1x256xf32>,
    %26 = vector.extract_strided_slice %6 {offsets = [0, 16], sizes = [4, 240], strides = [1, 1]} : vector<4x256xf32> to vector<4x240xf32>
    %27 = vector.extract_strided_slice %6 {offsets = [0, 0], sizes = [4, 16], strides = [1, 1]} : vector<4x256xf32> to vector<4x16xf32>
    %28 = tpu.concatenate %26, %27 in 1 : vector<4x240xf32>, vector<4x16xf32> -> vector<4x256xf32>
    %29 = arith.mulf %1, %28 : vector<4x256xf32>
    %cst_15 = arith.constant dense<0.000000e+00> : vector<256xf32>
    %30 = vector.multi_reduction <add>, %29, %cst_15 [0] : vector<4x256xf32> to vector<256xf32>
    %31 = vector.shape_cast %30 : vector<256xf32> to vector<1x256xf32>
    %c6 = arith.constant 6 : index
    %c0_16 = arith.constant 0 : index
    %32 = vector.load %arg3[%c6, %c0_16] : memref<9x256xf32, #tpu.memory_space<vmem>>, vector<1x256xf32>
    %33 = arith.mulf %31, %32 : vector<1x256xf32>
    %c0_17 = arith.constant 0 : index
    %c6_18 = arith.constant 6 : index
    %c0_19 = arith.constant 0 : index
    %34 = vector.load %arg4[%c0_17, %c6_18, %c0_19] : memref<1x9x256xf32, #tpu.memory_space<vmem>>, vector<1x1x256xf32>
    %35 = vector.shape_cast %34 : vector<1x1x256xf32> to vector<1x256xf32>
    %36 = vector.shape_cast %33 : vector<1x256xf32> to vector<1x1x256xf32>
    tpu.vector_store %arg4[%c0_17, %c6_18, %c0_19], %36 {strides = array<i32>} : memref<1x9x256xf32, #tpu.memory_space<vmem>>, vector<1x1x256xf32>,
    %37 = vector.extract_strided_slice %3 {offsets = [0, 240], sizes = [4, 16], strides = [1, 1]} : vector<4x256xf32> to vector<4x16xf32>
    %38 = vector.extract_strided_slice %3 {offsets = [0, 0], sizes = [4, 240], strides = [1, 1]} : vector<4x256xf32> to vector<4x240xf32>
    %39 = tpu.concatenate %37, %38 in 1 : vector<4x16xf32>, vector<4x240xf32> -> vector<4x256xf32>
    %40 = arith.mulf %1, %39 : vector<4x256xf32>
    %cst_20 = arith.constant dense<0.000000e+00> : vector<256xf32>
    %41 = vector.multi_reduction <add>, %40, %cst_20 [0] : vector<4x256xf32> to vector<256xf32>
    %42 = vector.shape_cast %41 : vector<256xf32> to vector<1x256xf32>
    %c1 = arith.constant 1 : index
    %c0_21 = arith.constant 0 : index
    %43 = vector.load %arg3[%c1, %c0_21] : memref<9x256xf32, #tpu.memory_space<vmem>>, vector<1x256xf32>
    %44 = arith.mulf %42, %43 : vector<1x256xf32>
    %c0_22 = arith.constant 0 : index
    %c1_23 = arith.constant 1 : index
    %c0_24 = arith.constant 0 : index
    %45 = vector.load %arg4[%c0_22, %c1_23, %c0_24] : memref<1x9x256xf32, #tpu.memory_space<vmem>>, vector<1x1x256xf32>
    %46 = vector.shape_cast %45 : vector<1x1x256xf32> to vector<1x256xf32>
    %47 = vector.shape_cast %44 : vector<1x256xf32> to vector<1x1x256xf32>
    tpu.vector_store %arg4[%c0_22, %c1_23, %c0_24], %47 {strides = array<i32>} : memref<1x9x256xf32, #tpu.memory_space<vmem>>, vector<1x1x256xf32>,
    %48 = arith.mulf %1, %3 : vector<4x256xf32>
    %cst_25 = arith.constant dense<0.000000e+00> : vector<256xf32>
    %49 = vector.multi_reduction <add>, %48, %cst_25 [0] : vector<4x256xf32> to vector<256xf32>
    %50 = vector.shape_cast %49 : vector<256xf32> to vector<1x256xf32>
    %c4 = arith.constant 4 : index
    %c0_26 = arith.constant 0 : index
    %51 = vector.load %arg3[%c4, %c0_26] : memref<9x256xf32, #tpu.memory_space<vmem>>, vector<1x256xf32>
    %52 = arith.mulf %50, %51 : vector<1x256xf32>
    %c0_27 = arith.constant 0 : index
    %c4_28 = arith.constant 4 : index
    %c0_29 = arith.constant 0 : index
    %53 = vector.load %arg4[%c0_27, %c4_28, %c0_29] : memref<1x9x256xf32, #tpu.memory_space<vmem>>, vector<1x1x256xf32>
    %54 = vector.shape_cast %53 : vector<1x1x256xf32> to vector<1x256xf32>
    %55 = vector.shape_cast %52 : vector<1x256xf32> to vector<1x1x256xf32>
    tpu.vector_store %arg4[%c0_27, %c4_28, %c0_29], %55 {strides = array<i32>} : memref<1x9x256xf32, #tpu.memory_space<vmem>>, vector<1x1x256xf32>,
    %56 = vector.extract_strided_slice %3 {offsets = [0, 16], sizes = [4, 240], strides = [1, 1]} : vector<4x256xf32> to vector<4x240xf32>
    %57 = vector.extract_strided_slice %3 {offsets = [0, 0], sizes = [4, 16], strides = [1, 1]} : vector<4x256xf32> to vector<4x16xf32>
    %58 = tpu.concatenate %56, %57 in 1 : vector<4x240xf32>, vector<4x16xf32> -> vector<4x256xf32>
    %59 = arith.mulf %1, %58 : vector<4x256xf32>
    %cst_30 = arith.constant dense<0.000000e+00> : vector<256xf32>
    %60 = vector.multi_reduction <add>, %59, %cst_30 [0] : vector<4x256xf32> to vector<256xf32>
    %61 = vector.shape_cast %60 : vector<256xf32> to vector<1x256xf32>
    %c7 = arith.constant 7 : index
    %c0_31 = arith.constant 0 : index
    %62 = vector.load %arg3[%c7, %c0_31] : memref<9x256xf32, #tpu.memory_space<vmem>>, vector<1x256xf32>
    %63 = arith.mulf %61, %62 : vector<1x256xf32>
    %c0_32 = arith.constant 0 : index
    %c7_33 = arith.constant 7 : index
    %c0_34 = arith.constant 0 : index
    %64 = vector.load %arg4[%c0_32, %c7_33, %c0_34] : memref<1x9x256xf32, #tpu.memory_space<vmem>>, vector<1x1x256xf32>
    %65 = vector.shape_cast %64 : vector<1x1x256xf32> to vector<1x256xf32>
    %66 = vector.shape_cast %63 : vector<1x256xf32> to vector<1x1x256xf32>
    tpu.vector_store %arg4[%c0_32, %c7_33, %c0_34], %66 {strides = array<i32>} : memref<1x9x256xf32, #tpu.memory_space<vmem>>, vector<1x1x256xf32>,
    %67 = vector.extract_strided_slice %3 {offsets = [0, 1], sizes = [4, 255], strides = [1, 1]} : vector<4x256xf32> to vector<4x255xf32>
    %68 = vector.extract_strided_slice %3 {offsets = [0, 0], sizes = [4, 1], strides = [1, 1]} : vector<4x256xf32> to vector<4x1xf32>
    %69 = tpu.concatenate %67, %68 in 1 : vector<4x255xf32>, vector<4x1xf32> -> vector<4x256xf32>
    %70 = vector.extract_strided_slice %69 {offsets = [0, 240], sizes = [4, 16], strides = [1, 1]} : vector<4x256xf32> to vector<4x16xf32>
    %71 = vector.extract_strided_slice %69 {offsets = [0, 0], sizes = [4, 240], strides = [1, 1]} : vector<4x256xf32> to vector<4x240xf32>
    %72 = tpu.concatenate %70, %71 in 1 : vector<4x16xf32>, vector<4x240xf32> -> vector<4x256xf32>
    %73 = arith.mulf %1, %72 : vector<4x256xf32>
    %cst_35 = arith.constant dense<0.000000e+00> : vector<256xf32>
    %74 = vector.multi_reduction <add>, %73, %cst_35 [0] : vector<4x256xf32> to vector<256xf32>
    %75 = vector.shape_cast %74 : vector<256xf32> to vector<1x256xf32>
    %c2 = arith.constant 2 : index
    %c0_36 = arith.constant 0 : index
    %76 = vector.load %arg3[%c2, %c0_36] : memref<9x256xf32, #tpu.memory_space<vmem>>, vector<1x256xf32>
    %77 = arith.mulf %75, %76 : vector<1x256xf32>
    %c0_37 = arith.constant 0 : index
    %c2_38 = arith.constant 2 : index
    %c0_39 = arith.constant 0 : index
    %78 = vector.load %arg4[%c0_37, %c2_38, %c0_39] : memref<1x9x256xf32, #tpu.memory_space<vmem>>, vector<1x1x256xf32>
    %79 = vector.shape_cast %78 : vector<1x1x256xf32> to vector<1x256xf32>
    %80 = vector.shape_cast %77 : vector<1x256xf32> to vector<1x1x256xf32>
    tpu.vector_store %arg4[%c0_37, %c2_38, %c0_39], %80 {strides = array<i32>} : memref<1x9x256xf32, #tpu.memory_space<vmem>>, vector<1x1x256xf32>,
    %81 = arith.mulf %1, %69 : vector<4x256xf32>
    %cst_40 = arith.constant dense<0.000000e+00> : vector<256xf32>
    %82 = vector.multi_reduction <add>, %81, %cst_40 [0] : vector<4x256xf32> to vector<256xf32>
    %83 = vector.shape_cast %82 : vector<256xf32> to vector<1x256xf32>
    %c5 = arith.constant 5 : index
    %c0_41 = arith.constant 0 : index
    %84 = vector.load %arg3[%c5, %c0_41] : memref<9x256xf32, #tpu.memory_space<vmem>>, vector<1x256xf32>
    %85 = arith.mulf %83, %84 : vector<1x256xf32>
    %c0_42 = arith.constant 0 : index
    %c5_43 = arith.constant 5 : index
    %c0_44 = arith.constant 0 : index
    %86 = vector.load %arg4[%c0_42, %c5_43, %c0_44] : memref<1x9x256xf32, #tpu.memory_space<vmem>>, vector<1x1x256xf32>
    %87 = vector.shape_cast %86 : vector<1x1x256xf32> to vector<1x256xf32>
    %88 = vector.shape_cast %85 : vector<1x256xf32> to vector<1x1x256xf32>
    tpu.vector_store %arg4[%c0_42, %c5_43, %c0_44], %88 {strides = array<i32>} : memref<1x9x256xf32, #tpu.memory_space<vmem>>, vector<1x1x256xf32>,
    %89 = vector.extract_strided_slice %69 {offsets = [0, 16], sizes = [4, 240], strides = [1, 1]} : vector<4x256xf32> to vector<4x240xf32>
    %90 = vector.extract_strided_slice %69 {offsets = [0, 0], sizes = [4, 16], strides = [1, 1]} : vector<4x256xf32> to vector<4x16xf32>
    %91 = tpu.concatenate %89, %90 in 1 : vector<4x240xf32>, vector<4x16xf32> -> vector<4x256xf32>
    %92 = arith.mulf %1, %91 : vector<4x256xf32>
    %cst_45 = arith.constant dense<0.000000e+00> : vector<256xf32>
    %93 = vector.multi_reduction <add>, %92, %cst_45 [0] : vector<4x256xf32> to vector<256xf32>
    %94 = vector.shape_cast %93 : vector<256xf32> to vector<1x256xf32>
    %c8 = arith.constant 8 : index
    %c0_46 = arith.constant 0 : index
    %95 = vector.load %arg3[%c8, %c0_46] : memref<9x256xf32, #tpu.memory_space<vmem>>, vector<1x256xf32>
    %96 = arith.mulf %94, %95 : vector<1x256xf32>
    %c0_47 = arith.constant 0 : index
    %c8_48 = arith.constant 8 : index
    %c0_49 = arith.constant 0 : index
    %97 = vector.load %arg4[%c0_47, %c8_48, %c0_49] : memref<1x9x256xf32, #tpu.memory_space<vmem>>, vector<1x1x256xf32>
    %98 = vector.shape_cast %97 : vector<1x1x256xf32> to vector<1x256xf32>
    %99 = vector.shape_cast %96 : vector<1x256xf32> to vector<1x1x256xf32>
    tpu.vector_store %arg4[%c0_47, %c8_48, %c0_49], %99 {strides = array<i32>} : memref<1x9x256xf32, #tpu.memory_space<vmem>>, vector<1x1x256xf32>,
    return
  }
  func.func @transform_0(%arg0: i32) -> (i32, i32, i32) {
    %c0_i32 = arith.constant 0 : i32
    %c0_i32_0 = arith.constant 0 : i32
    %c0_i32_1 = arith.constant 0 : i32
    return %arg0, %c0_i32, %c0_i32_0 : i32, i32, i32
  }
  func.func @transform_1(%arg0: i32) -> (i32, i32, i32) {
    %c0_i32 = arith.constant 0 : i32
    %c0_i32_0 = arith.constant 0 : i32
    %c0_i32_1 = arith.constant 0 : i32
    return %arg0, %c0_i32, %c0_i32_0 : i32, i32, i32
  }
  func.func @transform_2(%arg0: i32) -> (i32, i32) {
    %c0_i32 = arith.constant 0 : i32
    %c0_i32_0 = arith.constant 0 : i32
    %c0_i32_1 = arith.constant 0 : i32
    return %c0_i32, %c0_i32_0 : i32, i32
  }
  func.func @transform_3(%arg0: i32) -> (i32, i32, i32) {
    %c0_i32 = arith.constant 0 : i32
    %c0_i32_0 = arith.constant 0 : i32
    %c0_i32_1 = arith.constant 0 : i32
    return %arg0, %c0_i32, %c0_i32_0 : i32, i32, i32
  }
}

</mosaic_0001>

<llo_original>
// kernel: tpu_custom_call.1
$region0: #{tpu_custom_call.1}
  #allocation0 [shape = 'u32[]', space=smem, size = 0x4, offset = 0x4, fixed_abs, tag = 'smem constant byte address 0x4 - core index']
  #allocation1 [shape = 'u32[72,128]{1,0:T(1,128)}', space=vmem, size = 0x9000, scoped, tag = 'internal scratch']
  %s0 = inlined_call_operand.hbm [shape: f32[2,4,256], index: 0, kind: input, shape index: {}]
  %s1 = inlined_call_operand.hbm [shape: f32[2,4,256], index: 1, kind: input, shape index: {}]
  %s2 = inlined_call_operand.hbm [shape: f32[9,256], index: 2, kind: input, shape index: {}]
  %s3 = inlined_call_operand.vmem [shape: f32[2,9,256], index: 3, kind: output, shape index: {}]
  %s4 = sld [smem:[#allocation0]]
  $region57: #{tpu_custom_call.1} parent=0
    _
  %s6 = ssub.s32 1, %s4
  %s7 = scalar_select 0, %s6, %s4
  $region1: #{tpu_custom_call.1} parent=0
    #allocation2 [shape = 'u8[8192]{0}', space=vmem, size = 0x2000, scoped, tag = 'input window, operand 0']
    #allocation3 [shape = 's32[2]{0}', space=sflag, size = 0x8, scoped, tag = 'scoped memory for tpu_custom_call.1']
    #allocation4 [shape = 'u8[8192]{0}', space=vmem, size = 0x2000, scoped, tag = 'input window, operand 1']
    #allocation5 [shape = 's32[2]{0}', space=sflag, size = 0x8, scoped, tag = 'scoped memory for tpu_custom_call.1']
    #allocation6 [shape = 'u8[16384]{0}', space=vmem, size = 0x4000, scoped, tag = 'input window, operand 2, single buffered']
    %8 = vsyncpa [#allocation3], 0
    %s9 = scalar_lea.sflag [#allocation3], 1
    %10 = vsyncpa %s9, 0
    %11 = vsyncpa [#allocation5], 0
    %s12 = scalar_lea.sflag [#allocation5], 1
    %13 = vsyncpa %s12, 0
    loop: start=0, step=1, limit=4
    $region2: #{tpu_custom_call.1} parent=1 // loop_pre_header
      _
    $region3: #{tpu_custom_call.1} parent=1 // loop_header
      %s15 = sphi 0, %s19
      %p16 = scmp.ge.s32.totalorder %s15, 4
      %s25 = sphi 0, %s27
      %s28 = sphi 0, %s25
      %s29 = sphi 0, %s28
      %s45 = sphi 0, %s29
      %s51 = sphi 0, %s53
      %s54 = sphi 0, %s51
      %s55 = sphi 0, %s54
      %s71 = sphi 0, %s55
      %s75 = sphi 0, %s75
      %s77 = sphi 0, %s75
      %s78 = sphi 0, %s77
      %s92 = sphi 0, %s78
      %s98 = sphi 0, %s100
      %s101 = sphi 0, %s98
      %s102 = sphi 0, %s101
      %s118 = sphi 0, %s102
    $region4: #{tpu_custom_call.1} parent=1 // loop_header_branch
      %18 = sbr.rel (%p16) target = $region8
    $region5: #{tpu_custom_call.1} parent=1 // loop_body
      %s20 = ssub.s32 %s15, 1
      %s21 = ssub.s32 %s15, 2
      %s22 = sadd.s32 %s15, 1
      %s23 = ssub.s32 %s15, %s22
      %p24 = scmp.eq.s32.totalorder %s23, 0
      %s26 = sadd.s32 %s25, 1
      %s27 = scalar_select %p24, %s25, %s26
      %p30 = pneg %p24
      %p31 = scmp.eq.s32.totalorder %s15, 1
      %p32 = por %p30, %p31
      %p33 = scmp.ne.s32.totalorder %s25, %s28
      %p34 = scmp.eq.s32.totalorder %s15, 0
      %p35 = por %p33, %p34
      %p36 = scmp.ne.s32.totalorder %s25, %s28
      %p37 = scmp.eq.s32.totalorder %s20, 1
      %p38 = por %p36, %p37
      %p39 = scmp.ne.s32.totalorder %s28, %s29
      %p40 = scmp.eq.s32.totalorder %s20, 0
      %p41 = por %p39, %p40
      %p42 = scmp.ne.s32.totalorder %s28, %s29
      %p43 = scmp.eq.s32.totalorder %s21, 1
      %p44 = por %p42, %p43
      %p46 = scmp.ne.s32.totalorder %s29, %s45
      %p47 = scmp.eq.s32.totalorder %s21, 0
      %p48 = por %p46, %p47
      %s49 = ssub.s32 %s15, %s22
      %p50 = scmp.eq.s32.totalorder %s49, 0
      %s52 = sadd.s32 %s51, 1
      %s53 = scalar_select %p50, %s51, %s52
      %p56 = pneg %p50
      %p57 = scmp.eq.s32.totalorder %s15, 1
      %p58 = por %p56, %p57
      %p59 = scmp.ne.s32.totalorder %s51, %s54
      %p60 = scmp.eq.s32.totalorder %s15, 0
      %p61 = por %p59, %p60
      %p62 = scmp.ne.s32.totalorder %s51, %s54
      %p63 = scmp.eq.s32.totalorder %s20, 1
      %p64 = por %p62, %p63
      %p65 = scmp.ne.s32.totalorder %s54, %s55
      %p66 = scmp.eq.s32.totalorder %s20, 0
      %p67 = por %p65, %p66
      %p68 = scmp.ne.s32.totalorder %s54, %s55
      %p69 = scmp.eq.s32.totalorder %s21, 1
      %p70 = por %p68, %p69
      %p72 = scmp.ne.s32.totalorder %s55, %s71
      %p73 = scmp.eq.s32.totalorder %s21, 0
      %p74 = por %p72, %p73
      %s76 = sadd.s32 %s75, 1
      %p79 = scmp.eq.s32.totalorder %s15, 1
      %p80 = scmp.ne.s32.totalorder %s75, %s77
      %p81 = scmp.eq.s32.totalorder %s15, 0
      %p82 = por %p80, %p81
      %p83 = scmp.ne.s32.totalorder %s75, %s77
      %p84 = scmp.eq.s32.totalorder %s20, 1
      %p85 = por %p83, %p84
      %p86 = scmp.ne.s32.totalorder %s77, %s78
      %p87 = scmp.eq.s32.totalorder %s20, 0
      %p88 = por %p86, %p87
      %p89 = scmp.ne.s32.totalorder %s77, %s78
      %p90 = scmp.eq.s32.totalorder %s21, 1
      %p91 = por %p89, %p90
      %p93 = scmp.ne.s32.totalorder %s78, %s92
      %p94 = scmp.eq.s32.totalorder %s21, 0
      %p95 = por %p93, %p94
      %s96 = ssub.s32 %s15, %s22
      %p97 = scmp.eq.s32.totalorder %s96, 0
      %s99 = sadd.s32 %s98, 1
      %s100 = scalar_select %p97, %s98, %s99
      %p103 = pneg %p97
      %p104 = scmp.eq.s32.totalorder %s15, 1
      %p105 = por %p103, %p104
      %p106 = scmp.ne.s32.totalorder %s98, %s101
      %p107 = scmp.eq.s32.totalorder %s15, 0
      %p108 = por %p106, %p107
      %p109 = scmp.ne.s32.totalorder %s98, %s101
      %p110 = scmp.eq.s32.totalorder %s20, 1
      %p111 = por %p109, %p110
      %p112 = scmp.ne.s32.totalorder %s101, %s102
      %p113 = scmp.eq.s32.totalorder %s20, 0
      %p114 = por %p112, %p113
      %p115 = scmp.ne.s32.totalorder %s101, %s102
      %p116 = scmp.eq.s32.totalorder %s21, 1
      %p117 = por %p115, %p116
      %p119 = scmp.ne.s32.totalorder %s102, %s118
      %p120 = scmp.eq.s32.totalorder %s21, 0
      %p121 = por %p119, %p120
      %p122 = scmp.le.s32.totalorder 1, %s15
      %p123 = scmp.lt.s32.totalorder %s15, 3
      %p124 = pnand %p122, %p123
      %p125 = pneg %p124
      // Predicated region
      $region9: #{tpu_custom_call.1} parent=5 // pred_check
        _
      $region10: #{tpu_custom_call.1} parent=5 // pred_check_branch
        %127 = sbr.rel (%p124) target = $region12
      $region11: #{tpu_custom_call.1} parent=5 // pred_region
        %s128 = ssub.s32 %s15, 1
        // Predicated region
        $region13: #{tpu_custom_call.1} parent=11 // pred_check
          %p129 = pneg %p88
        $region14: #{tpu_custom_call.1} parent=11 // pred_check_branch
          %131 = sbr.rel (%p129) target = $region16
        $region15: #{tpu_custom_call.1} parent=11 // pred_region
          %133 = vsyncadd [#allocation5], 0
          %s134 = sshll.u32 %s2, 4
          %s135 = int_to_ptr.hbm [resolvable:$true] %s134
          %s136 = sshll.u32 [#allocation6], 4
          %s137 = int_to_ptr.vmem [resolvable:$true] %s136
          %142 = dma.hbm_to_vmem [thread:$0]  %s135, 512, %s137, [#allocation5], 256, 256, 16
        $region16: #{tpu_custom_call.1} parent=11 // pred_fallthru
          _
      $region12: #{tpu_custom_call.1} parent=5 // pred_fallthru
        _
      %p143 = scmp.lt.s32.totalorder %s15, 2
      // Predicated region
      $region17: #{tpu_custom_call.1} parent=5 // pred_check
        %p144 = pneg %p143
      $region18: #{tpu_custom_call.1} parent=5 // pred_check_branch
        %146 = sbr.rel (%p144) target = $region20
      $region19: #{tpu_custom_call.1} parent=5 // pred_region
        // Predicated region
        $region21: #{tpu_custom_call.1} parent=19 // pred_check
          %p147 = pneg %p35
        $region22: #{tpu_custom_call.1} parent=19 // pred_check_branch
          %149 = sbr.rel (%p147) target = $region24
        $region23: #{tpu_custom_call.1} parent=19 // pred_region
          %s150 = sand.u32 %s25, 1
          %s151 = scalar_lea.sflag [#allocation3], %s150
          %s152 = sand.u32 %s25, 1
          %s153 = smul.addr %s152, 8
          %s154 = scalar_lea.vmem [#allocation2], %s153
          %156 = vsyncadd %s151, 0
          %s157 = smul.addr %s15, 2
          %s158 = smul.addr %s157, 4
          %s159 = scalar_lea.hbm %s0, %s158
          %s161 = sshll.u32 %s159, 4
          %s162 = int_to_ptr.hbm [resolvable:$true] %s161
          %s163 = sshll.u32 %s154, 4
          %s164 = int_to_ptr.vmem [resolvable:$true] %s163
          %166 = dma.hbm_to_vmem [thread:$0]  %s162, 128, %s164, %s151
        $region24: #{tpu_custom_call.1} parent=19 // pred_fallthru
          _
        // Predicated region
        $region25: #{tpu_custom_call.1} parent=19 // pred_check
          %p167 = pneg %p61
        $region26: #{tpu_custom_call.1} parent=19 // pred_check_branch
          %169 = sbr.rel (%p167) target = $region28
        $region27: #{tpu_custom_call.1} parent=19 // pred_region
          %s170 = sand.u32 %s15, 1
          %s171 = scalar_lea.sflag [#allocation5], %s170
          %s172 = sand.u32 %s51, 1
          %s173 = smul.addr %s172, 8
          %s174 = scalar_lea.vmem [#allocation4], %s173
          %176 = vsyncadd %s171, 0
          %s177 = smul.addr %s15, 2
          %s178 = smul.addr %s177, 4
          %s179 = scalar_lea.hbm %s1, %s178
          %s181 = sshll.u32 %s179, 4
          %s182 = int_to_ptr.hbm [resolvable:$true] %s181
          %s183 = sshll.u32 %s174, 4
          %s184 = int_to_ptr.vmem [resolvable:$true] %s183
          %186 = dma.hbm_to_vmem [thread:$0]  %s182, 128, %s184, %s171
        $region28: #{tpu_custom_call.1} parent=19 // pred_fallthru
          _
      $region20: #{tpu_custom_call.1} parent=5 // pred_fallthru
        _
      %p187 = scmp.le.s32.totalorder 1, %s15
      %p188 = scmp.lt.s32.totalorder %s15, 3
      %p189 = pnand %p187, %p188
      %p190 = pneg %p189
      // Predicated region
      $region29: #{tpu_custom_call.1} parent=5 // pred_check
        _
      $region30: #{tpu_custom_call.1} parent=5 // pred_check_branch
        %192 = sbr.rel (%p189) target = $region32
      $region31: #{tpu_custom_call.1} parent=5 // pred_region
        %s193 = ssub.s32 %s15, 1
        %s194 = sand.u32 %s28, 1
        %s195 = scalar_lea.sflag [#allocation3], %s194
        %s196 = sand.u32 %s28, 1
        %s197 = smul.addr %s196, 8
        %s198 = scalar_lea.vmem [#allocation2], %s197
        // Predicated region
        $region33: #{tpu_custom_call.1} parent=31 // pred_check
          %p199 = pneg %p41
        $region34: #{tpu_custom_call.1} parent=31 // pred_check_branch
          %201 = sbr.rel (%p199) target = $region36
        $region35: #{tpu_custom_call.1} parent=31 // pred_region
          %203 = dma.done %s195, 128
        $region36: #{tpu_custom_call.1} parent=31 // pred_fallthru
          _
        %s204 = sand.u32 %s20, 1
        %s205 = scalar_lea.sflag [#allocation5], %s204
        %s206 = sand.u32 %s54, 1
        %s207 = smul.addr %s206, 8
        %s208 = scalar_lea.vmem [#allocation4], %s207
        // Predicated region
        $region37: #{tpu_custom_call.1} parent=31 // pred_check
          %p209 = pneg %p67
        $region38: #{tpu_custom_call.1} parent=31 // pred_check_branch
          %211 = sbr.rel (%p209) target = $region40
        $region39: #{tpu_custom_call.1} parent=31 // pred_region
          %213 = dma.done %s205, 128
        $region40: #{tpu_custom_call.1} parent=31 // pred_fallthru
          _
        // Predicated region
        $region41: #{tpu_custom_call.1} parent=31 // pred_check
          %p214 = pneg %p88
        $region42: #{tpu_custom_call.1} parent=31 // pred_check_branch
          %216 = sbr.rel (%p214) target = $region44
        $region43: #{tpu_custom_call.1} parent=31 // pred_region
          %218 = dma.done [#allocation5], 512
        $region44: #{tpu_custom_call.1} parent=31 // pred_fallthru
          _
        %s219 = sand.u32 %s28, 1
        %s220 = scalar_lea.sflag [#allocation3], %s219
        %s221 = sand.u32 %s28, 1
        %s222 = smul.addr %s221, 8
        %s223 = scalar_lea.vmem [#allocation2], %s222
        %p224 = pneg %p41
        %p225 = pneg %p38
        %s226 = sand.u32 %s20, 1
        %s227 = scalar_lea.sflag [#allocation5], %s226
        %s228 = sand.u32 %s54, 1
        %s229 = smul.addr %s228, 8
        %s230 = scalar_lea.vmem [#allocation4], %s229
        %p231 = pneg %p67
        %p232 = pneg %p64
        %p233 = pneg %p88
        %p234 = pneg %p85
        %p235 = pneg %p114
        %p236 = pneg %p111
        %p237 = scmp.lt.s32.totalorder %s20, 1
        %s238 = scalar_select %p237, %s20, 1
        %s239 = smul.addr %s238, 4
        %s240 = smul.addr %s239, 8
        %s241 = scalar_lea.vmem %s3, %s240
        %p242 = scmp.lt.s32.totalorder %s20, 1
        %s243 = scalar_select %p242, %s20, 1
        %s244 = smul.addr %s243, 4
        %s245 = smul.addr %s244, 8
        %s246 = scalar_lea.vmem %s3, %s245
        %v247 = vld [vmem:[%s198] sm:$0xff]
        %v248 = vld [vmem:[%s208] sm:$0xff]
        %250 = vst [vmem:[#allocation1] ss:$2 sm:$0xff] %v248
        %v251 = vld.sshfl [vmem:[#allocation1 + $0x8] sm:$0xff pattern:$0x75316420]
        %252 = vrot.lane.b32.xlu0 %v251, 1
        %v253 = vpop.permute.xlu0 %252
        %255 = vst [vmem:[#allocation1] ss:$2 sm:$0xff] %v248
        %v256 = vld.sshfl [vmem:[#allocation1] sm:$0xff pattern:$0x75316420]
        %v257 = vld.sshfl [vmem:[#allocation1 + $0x8] sm:$0xff pattern:$0x75316420]
        %258 = vrot.lane.b32.xlu0 %v256, 1
        %v259 = vpop.permute.xlu0 %258
        %260 = vrot.lane.b32.xlu0 %v257, 1
        %v261 = vpop.permute.xlu0 %260
        %vm262 = vcmask 7168
        %v263 = vsel %vm262, %v259, %v261
        %v265 = vsel %vm262, %v253, %v259
        %266 = vrot.lane.b32.xlu0 %v263, 16
        %v267 = vpop.permute.xlu0 %266
        %270 = vrot.lane.b32.xlu0 %v265, 16
        %v271 = vpop.permute.xlu0 %270
        %vm272 = vcmask 130048
        %v273 = vsel %vm272, %v271, %v267
        %v275 = vsel %vm272, %v267, %v271
        %v277 = vrot.slane %v273, 4
        %vm278 = vcmask 1043456
        %v279 = vsel %vm278, %v275, %v277
        %v281 = vmul.f32 %v247, %v279
        %283 = vst [vmem:[#allocation1] ss:$2 sm:$0xff] %v281
        %v284 = vld.sshfl [vmem:[#allocation1] sm:$0xff pattern:$0x75316420]
        %v285 = vld.sshfl [vmem:[#allocation1 + $0x8] sm:$0xff pattern:$0x75316420]
        %v288 = vsel %vm278, %v284, 0.0
        %v289 = vrot.slane %v288, 4
        %v290 = vadd.f32 %v288, %v289
        %v291 = vrot.slane %v290, 2
        %v292 = vadd.f32 %v290, %v291
        %v293 = vrot.slane %v292, 1
        %v294 = vadd.f32 %v292, %v293
        %v295 = vsel %vm278, %v285, 0.0
        %v296 = vrot.slane %v295, 4
        %v297 = vadd.f32 %v295, %v296
        %v298 = vrot.slane %v297, 2
        %v299 = vadd.f32 %v297, %v298
        %v300 = vrot.slane %v299, 1
        %v301 = vadd.f32 %v299, %v300
        %v302 = vld [vmem:[#allocation6] ss:$8 sm:$0x3]
        %v304 = vperm.slane %v302, 0
        %v305 = vperm.slane %v302, 1
        %v308 = vmul.f32 %v294, %v304
        %v309 = vmul.f32 %v301, %v305
        %v312 = vrot.slane %v309, 7
        %vm313 = vcmask 1040384
        %v314 = vsel %vm313, %v308, %v312
        %v316 = vlaneseq
        %vm317 = vcmp.ge.s32.totalorder %v316, 0
        %vm318 = vcmp.lt.s32.totalorder %v316, 256
        %vm319 = vmand %vm317, %vm318
        %320 = vst.msk [vmem:[%s246] ss:$8 sm:$0x3] %vm319, %v314
        %321 = vst.msk [vmem:[%s246] ss:$8 sm:$0x0] %vm319, %v314
        %v322 = vrot.slane %v263, 4
        %v323 = vsel %vm278, %v265, %v322
        %v325 = vmul.f32 %v247, %v323
        %327 = vst [vmem:[#allocation1] ss:$2 sm:$0xff] %v325
        %v328 = vld.sshfl [vmem:[#allocation1] sm:$0xff pattern:$0x75316420]
        %v329 = vld.sshfl [vmem:[#allocation1 + $0x8] sm:$0xff pattern:$0x75316420]
        %v332 = vsel %vm278, %v328, 0.0
        %v333 = vrot.slane %v332, 4
        %v334 = vadd.f32 %v332, %v333
        %v335 = vrot.slane %v334, 2
        %v336 = vadd.f32 %v334, %v335
        %v337 = vrot.slane %v336, 1
        %v338 = vadd.f32 %v336, %v337
        %v339 = vsel %vm278, %v329, 0.0
        %v340 = vrot.slane %v339, 4
        %v341 = vadd.f32 %v339, %v340
        %v342 = vrot.slane %v341, 2
        %v343 = vadd.f32 %v341, %v342
        %v344 = vrot.slane %v343, 1
        %v345 = vadd.f32 %v343, %v344
        %s346 = scalar_lea.vmem [#allocation6], 3
        %v347 = vld [vmem:[%s346] ss:$8 sm:$0x3]
        %v349 = vperm.slane %v347, 0
        %v350 = vperm.slane %v347, 1
        %v353 = vmul.f32 %v338, %v349
        %v354 = vmul.f32 %v345, %v350
        %v357 = vrot.slane %v354, 7
        %v358 = vsel %vm313, %v353, %v357
        %s360 = scalar_lea.vmem %s246, 3
        %361 = vst.msk [vmem:[%s360] ss:$8 sm:$0x3] %vm319, %v358
        %362 = vst.msk [vmem:[%s360] ss:$8 sm:$0x0] %vm319, %v358
        %363 = vrot.lane.b32.xlu0 %v265, 112
        %v364 = vpop.permute.xlu0 %363
        %365 = vrot.lane.b32.xlu0 %v263, 112
        %v366 = vpop.permute.xlu0 %365
        %vm367 = vcmask 916480
        %v368 = vsel %vm367, %v364, %v366
        %v371 = vsel %vm367, %v366, %v364
        %v373 = vrot.slane %v371, 4
        %v374 = vsel %vm278, %v368, %v373
        %v376 = vmul.f32 %v247, %v374
        %378 = vst [vmem:[#allocation1] ss:$2 sm:$0xff] %v376
        %v379 = vld.sshfl [vmem:[#allocation1] sm:$0xff pattern:$0x75316420]
        %v380 = vld.sshfl [vmem:[#allocation1 + $0x8] sm:$0xff pattern:$0x75316420]
        %v383 = vsel %vm278, %v379, 0.0
        %v384 = vrot.slane %v383, 4
        %v385 = vadd.f32 %v383, %v384
        %v386 = vrot.slane %v385, 2
        %v387 = vadd.f32 %v385, %v386
        %v388 = vrot.slane %v387, 1
        %v389 = vadd.f32 %v387, %v388
        %v390 = vsel %vm278, %v380, 0.0
        %v391 = vrot.slane %v390, 4
        %v392 = vadd.f32 %v390, %v391
        %v393 = vrot.slane %v392, 2
        %v394 = vadd.f32 %v392, %v393
        %v395 = vrot.slane %v394, 1
        %v396 = vadd.f32 %v394, %v395
        %s397 = scalar_lea.vmem [#allocation6], 6
        %v398 = vld [vmem:[%s397] ss:$8 sm:$0x3]
        %v400 = vperm.slane %v398, 0
        %v401 = vperm.slane %v398, 1
        %v404 = vmul.f32 %v389, %v400
        %v405 = vmul.f32 %v396, %v401
        %v408 = vrot.slane %v405, 7
        %v409 = vsel %vm313, %v404, %v408
        %s411 = scalar_lea.vmem %s246, 6
        %412 = vst.msk [vmem:[%s411] ss:$8 sm:$0x3] %vm319, %v409
        %413 = vst.msk [vmem:[%s411] ss:$8 sm:$0x0] %vm319, %v409
        %414 = vst [vmem:[#allocation1] ss:$2 sm:$0xff] %v248
        %v415 = vld.sshfl [vmem:[#allocation1 + $0x8] sm:$0xff pattern:$0x75316420]
        %416 = vrot.lane.b32.xlu0 %v415, 16
        %v417 = vpop.permute.xlu0 %416
        %419 = vst [vmem:[#allocation1] ss:$2 sm:$0xff] %v248
        %v420 = vld.sshfl [vmem:[#allocation1] sm:$0xff pattern:$0x75316420]
        %v421 = vld.sshfl [vmem:[#allocation1 + $0x8] sm:$0xff pattern:$0x75316420]
        %422 = vrot.lane.b32.xlu0 %v420, 16
        %v423 = vpop.permute.xlu0 %422
        %424 = vrot.lane.b32.xlu0 %v421, 16
        %v425 = vpop.permute.xlu0 %424
        %v426 = vsel %vm272, %v423, %v425
        %v428 = vsel %vm272, %v417, %v423
        %v430 = vrot.slane %v426, 4
        %v431 = vsel %vm278, %v428, %v430
        %v433 = vmul.f32 %v247, %v431
        %435 = vst [vmem:[#allocation1] ss:$2 sm:$0xff] %v433
        %v436 = vld.sshfl [vmem:[#allocation1] sm:$0xff pattern:$0x75316420]
        %v437 = vld.sshfl [vmem:[#allocation1 + $0x8] sm:$0xff pattern:$0x75316420]
        %v440 = vsel %vm278, %v436, 0.0
        %v441 = vrot.slane %v440, 4
        %v442 = vadd.f32 %v440, %v441
        %v443 = vrot.slane %v442, 2
        %v444 = vadd.f32 %v442, %v443
        %v445 = vrot.slane %v444, 1
        %v446 = vadd.f32 %v444, %v445
        %v447 = vsel %vm278, %v437, 0.0
        %v448 = vrot.slane %v447, 4
        %v449 = vadd.f32 %v447, %v448
        %v450 = vrot.slane %v449, 2
        %v451 = vadd.f32 %v449, %v450
        %v452 = vrot.slane %v451, 1
        %v453 = vadd.f32 %v451, %v452
        %s454 = scalar_lea.vmem [#allocation6], 1
        %v455 = vld [vmem:[%s454] ss:$8 sm:$0x3]
        %v457 = vperm.slane %v455, 0
        %v458 = vperm.slane %v455, 1
        %v461 = vmul.f32 %v446, %v457
        %v462 = vmul.f32 %v453, %v458
        %v465 = vrot.slane %v462, 7
        %v466 = vsel %vm313, %v461, %v465
        %s468 = scalar_lea.vmem %s246, 1
        %469 = vst.msk [vmem:[%s468] ss:$8 sm:$0x3] %vm319, %v466
        %470 = vst.msk [vmem:[%s468] ss:$8 sm:$0x0] %vm319, %v466
        %v471 = vmul.f32 %v247, %v248
        %473 = vst [vmem:[#allocation1] ss:$2 sm:$0xff] %v471
        %v474 = vld.sshfl [vmem:[#allocation1] sm:$0xff pattern:$0x75316420]
        %v475 = vld.sshfl [vmem:[#allocation1 + $0x8] sm:$0xff pattern:$0x75316420]
        %v478 = vsel %vm278, %v474, 0.0
        %v479 = vrot.slane %v478, 4
        %v480 = vadd.f32 %v478, %v479
        %v481 = vrot.slane %v480, 2
        %v482 = vadd.f32 %v480, %v481
        %v483 = vrot.slane %v482, 1
        %v484 = vadd.f32 %v482, %v483
        %v485 = vsel %vm278, %v475, 0.0
        %v486 = vrot.slane %v485, 4
        %v487 = vadd.f32 %v485, %v486
        %v488 = vrot.slane %v487, 2
        %v489 = vadd.f32 %v487, %v488
        %v490 = vrot.slane %v489, 1
        %v491 = vadd.f32 %v489, %v490
        %s492 = scalar_lea.vmem [#allocation6], 4
        %v493 = vld [vmem:[%s492] ss:$8 sm:$0x3]
        %v495 = vperm.slane %v493, 0
        %v496 = vperm.slane %v493, 1
        %v499 = vmul.f32 %v484, %v495
        %v500 = vmul.f32 %v491, %v496
        %v503 = vrot.slane %v500, 7
        %v504 = vsel %vm313, %v499, %v503
        %s506 = scalar_lea.vmem %s246, 4
        %507 = vst.msk [vmem:[%s506] ss:$8 sm:$0x3] %vm319, %v504
        %508 = vst.msk [vmem:[%s506] ss:$8 sm:$0x0] %vm319, %v504
        %509 = vst [vmem:[#allocation1] ss:$2 sm:$0xff] %v248
        %v510 = vld.sshfl [vmem:[#allocation1] sm:$0xff pattern:$0x75316420]
        %v511 = vld.sshfl [vmem:[#allocation1 + $0x8] sm:$0xff pattern:$0x75316420]
        %512 = vrot.lane.b32.xlu0 %v510, 112
        %v513 = vpop.permute.xlu0 %512
        %514 = vrot.lane.b32.xlu0 %v511, 112
        %v515 = vpop.permute.xlu0 %514
        %v516 = vsel %vm367, %v513, %v515
        %518 = vst [vmem:[#allocation1] ss:$2 sm:$0xff] %v248
        %v519 = vld.sshfl [vmem:[#allocation1] sm:$0xff pattern:$0x75316420]
        %520 = vrot.lane.b32.xlu0 %v519, 112
        %v521 = vpop.permute.xlu0 %520
        %v523 = vsel %vm367, %v515, %v521
        %v525 = vrot.slane %v523, 4
        %v526 = vsel %vm278, %v516, %v525
        %v528 = vmul.f32 %v247, %v526
        %530 = vst [vmem:[#allocation1] ss:$2 sm:$0xff] %v528
        %v531 = vld.sshfl [vmem:[#allocation1] sm:$0xff pattern:$0x75316420]
        %v532 = vld.sshfl [vmem:[#allocation1 + $0x8] sm:$0xff pattern:$0x75316420]
        %v535 = vsel %vm278, %v531, 0.0
        %v536 = vrot.slane %v535, 4
        %v537 = vadd.f32 %v535, %v536
        %v538 = vrot.slane %v537, 2
        %v539 = vadd.f32 %v537, %v538
        %v540 = vrot.slane %v539, 1
        %v541 = vadd.f32 %v539, %v540
        %v542 = vsel %vm278, %v532, 0.0
        %v543 = vrot.slane %v542, 4
        %v544 = vadd.f32 %v542, %v543
        %v545 = vrot.slane %v544, 2
        %v546 = vadd.f32 %v544, %v545
        %v547 = vrot.slane %v546, 1
        %v548 = vadd.f32 %v546, %v547
        %s549 = scalar_lea.vmem [#allocation6], 7
        %v550 = vld [vmem:[%s549] ss:$8 sm:$0x3]
        %v552 = vperm.slane %v550, 0
        %v553 = vperm.slane %v550, 1
        %v556 = vmul.f32 %v541, %v552
        %v557 = vmul.f32 %v548, %v553
        %v560 = vrot.slane %v557, 7
        %v561 = vsel %vm313, %v556, %v560
        %s563 = scalar_lea.vmem %s246, 7
        %564 = vst.msk [vmem:[%s563] ss:$8 sm:$0x3] %vm319, %v561
        %565 = vst.msk [vmem:[%s563] ss:$8 sm:$0x0] %vm319, %v561
        %566 = vst [vmem:[#allocation1] ss:$2 sm:$0xff] %v248
        %v567 = vld.sshfl [vmem:[#allocation1] sm:$0xff pattern:$0x75316420]
        %v568 = vld.sshfl [vmem:[#allocation1 + $0x8] sm:$0xff pattern:$0x75316420]
        %569 = vrot.lane.b32.xlu0 %v567, 127
        %v570 = vpop.permute.xlu0 %569
        %571 = vrot.lane.b32.xlu0 %v568, 127
        %v572 = vpop.permute.xlu0 %571
        %vm573 = vcmask 1039360
        %v574 = vsel %vm573, %v570, %v572
        %576 = vst [vmem:[#allocation1] ss:$2 sm:$0xff] %v248
        %v577 = vld.sshfl [vmem:[#allocation1] sm:$0xff pattern:$0x75316420]
        %578 = vrot.lane.b32.xlu0 %v577, 127
        %v579 = vpop.permute.xlu0 %578
        %v581 = vsel %vm573, %v572, %v579
        %583 = vrot.lane.b32.xlu0 %v581, 16
        %v584 = vpop.permute.xlu0 %583
        %586 = vrot.lane.b32.xlu0 %v574, 16
        %v587 = vpop.permute.xlu0 %586
        %v588 = vsel %vm272, %v587, %v584
        %v590 = vsel %vm272, %v584, %v587
        %v592 = vrot.slane %v588, 4
        %v593 = vsel %vm278, %v590, %v592
        %v595 = vmul.f32 %v247, %v593
        %597 = vst [vmem:[#allocation1] ss:$2 sm:$0xff] %v595
        %v598 = vld.sshfl [vmem:[#allocation1] sm:$0xff pattern:$0x75316420]
        %v599 = vld.sshfl [vmem:[#allocation1 + $0x8] sm:$0xff pattern:$0x75316420]
        %v602 = vsel %vm278, %v598, 0.0
        %v603 = vrot.slane %v602, 4
        %v604 = vadd.f32 %v602, %v603
        %v605 = vrot.slane %v604, 2
        %v606 = vadd.f32 %v604, %v605
        %v607 = vrot.slane %v606, 1
        %v608 = vadd.f32 %v606, %v607
        %v609 = vsel %vm278, %v599, 0.0
        %v610 = vrot.slane %v609, 4
        %v611 = vadd.f32 %v609, %v610
        %v612 = vrot.slane %v611, 2
        %v613 = vadd.f32 %v611, %v612
        %v614 = vrot.slane %v613, 1
        %v615 = vadd.f32 %v613, %v614
        %s616 = scalar_lea.vmem [#allocation6], 2
        %v617 = vld [vmem:[%s616] ss:$8 sm:$0x3]
        %v619 = vperm.slane %v617, 0
        %v620 = vperm.slane %v617, 1
        %v623 = vmul.f32 %v608, %v619
        %v624 = vmul.f32 %v615, %v620
        %v627 = vrot.slane %v624, 7
        %v628 = vsel %vm313, %v623, %v627
        %s630 = scalar_lea.vmem %s246, 2
        %631 = vst.msk [vmem:[%s630] ss:$8 sm:$0x3] %vm319, %v628
        %632 = vst.msk [vmem:[%s630] ss:$8 sm:$0x0] %vm319, %v628
        %v633 = vrot.slane %v581, 4
        %v634 = vsel %vm278, %v574, %v633
        %v636 = vmul.f32 %v247, %v634
        %638 = vst [vmem:[#allocation1] ss:$2 sm:$0xff] %v636
        %v639 = vld.sshfl [vmem:[#allocation1] sm:$0xff pattern:$0x75316420]
        %v640 = vld.sshfl [vmem:[#allocation1 + $0x8] sm:$0xff pattern:$0x75316420]
        %v643 = vsel %vm278, %v639, 0.0
        %v644 = vrot.slane %v643, 4
        %v645 = vadd.f32 %v643, %v644
        %v646 = vrot.slane %v645, 2
        %v647 = vadd.f32 %v645, %v646
        %v648 = vrot.slane %v647, 1
        %v649 = vadd.f32 %v647, %v648
        %v650 = vsel %vm278, %v640, 0.0
        %v651 = vrot.slane %v650, 4
        %v652 = vadd.f32 %v650, %v651
        %v653 = vrot.slane %v652, 2
        %v654 = vadd.f32 %v652, %v653
        %v655 = vrot.slane %v654, 1
        %v656 = vadd.f32 %v654, %v655
        %s657 = scalar_lea.vmem [#allocation6], 5
        %v658 = vld [vmem:[%s657] ss:$8 sm:$0x3]
        %v660 = vperm.slane %v658, 0
        %v661 = vperm.slane %v658, 1
        %v664 = vmul.f32 %v649, %v660
        %v665 = vmul.f32 %v656, %v661
        %v668 = vrot.slane %v665, 7
        %v669 = vsel %vm313, %v664, %v668
        %s671 = scalar_lea.vmem %s246, 5
        %672 = vst.msk [vmem:[%s671] ss:$8 sm:$0x3] %vm319, %v669
        %673 = vst.msk [vmem:[%s671] ss:$8 sm:$0x0] %vm319, %v669
        %674 = vrot.lane.b32.xlu0 %v574, 112
        %v675 = vpop.permute.xlu0 %674
        %676 = vrot.lane.b32.xlu0 %v581, 112
        %v677 = vpop.permute.xlu0 %676
        %v678 = vsel %vm367, %v675, %v677
        %v681 = vsel %vm367, %v677, %v675
        %v683 = vrot.slane %v681, 4
        %v684 = vsel %vm278, %v678, %v683
        %v686 = vmul.f32 %v247, %v684
        %688 = vst [vmem:[#allocation1] ss:$2 sm:$0xff] %v686
        %v689 = vld.sshfl [vmem:[#allocation1] sm:$0xff pattern:$0x75316420]
        %v690 = vld.sshfl [vmem:[#allocation1 + $0x8] sm:$0xff pattern:$0x75316420]
        %v693 = vsel %vm278, %v689, 0.0
        %v694 = vrot.slane %v693, 4
        %v695 = vadd.f32 %v693, %v694
        %v696 = vrot.slane %v695, 2
        %v697 = vadd.f32 %v695, %v696
        %v698 = vrot.slane %v697, 1
        %v699 = vadd.f32 %v697, %v698
        %v700 = vsel %vm278, %v690, 0.0
        %v701 = vrot.slane %v700, 4
        %v702 = vadd.f32 %v700, %v701
        %v703 = vrot.slane %v702, 2
        %v704 = vadd.f32 %v702, %v703
        %v705 = vrot.slane %v704, 1
        %v706 = vadd.f32 %v704, %v705
        %s707 = scalar_lea.vmem [#allocation6], 16
        %v708 = vld [vmem:[%s707] ss:$8 sm:$0x3]
        %v710 = vperm.slane %v708, 0
        %v711 = vperm.slane %v708, 1
        %v714 = vmul.f32 %v699, %v710
        %v715 = vmul.f32 %v706, %v711
        %v718 = vrot.slane %v715, 7
        %v719 = vsel %vm313, %v714, %v718
        %s721 = scalar_lea.vmem %s246, 16
        %722 = vst.msk [vmem:[%s721] ss:$8 sm:$0x3] %vm319, %v719
        %723 = vst.msk [vmem:[%s721] ss:$8 sm:$0x0] %vm319, %v719
        %p724 = scmp.lt.s32.totalorder %s20, 1
        %s725 = scalar_select %p724, %s20, 1
        %s726 = smul.addr %s725, 4
        %s727 = smul.addr %s726, 8
        %s728 = scalar_lea.vmem %s3, %s727
        // Predicated region
        $region45: #{tpu_custom_call.1} parent=31 // pred_check
          %p729 = pneg %p111
        $region46: #{tpu_custom_call.1} parent=31 // pred_check_branch
          %731 = sbr.rel (%p729) target = $region48
        $region47: #{tpu_custom_call.1} parent=31 // pred_region
          _
        $region48: #{tpu_custom_call.1} parent=31 // pred_fallthru
          _
      $region32: #{tpu_custom_call.1} parent=5 // pred_fallthru
        _
      %p732 = scmp.le.s32.totalorder 2, %s15
      // Predicated region
      $region49: #{tpu_custom_call.1} parent=5 // pred_check
        %p733 = pneg %p732
      $region50: #{tpu_custom_call.1} parent=5 // pred_check_branch
        %735 = sbr.rel (%p733) target = $region52
      $region51: #{tpu_custom_call.1} parent=5 // pred_region
        %s736 = ssub.s32 %s15, 2
        // Predicated region
        $region53: #{tpu_custom_call.1} parent=51 // pred_check
          %p737 = pneg %p117
        $region54: #{tpu_custom_call.1} parent=51 // pred_check_branch
          %739 = sbr.rel (%p737) target = $region56
        $region55: #{tpu_custom_call.1} parent=51 // pred_region
          %p740 = scmp.lt.s32.totalorder %s21, 1
          %s741 = scalar_select %p740, %s21, 1
          %s742 = smul.addr %s741, 4
          %s743 = smul.addr %s742, 8
          %s744 = scalar_lea.vmem %s3, %s743
        $region56: #{tpu_custom_call.1} parent=51 // pred_fallthru
          _
      $region52: #{tpu_custom_call.1} parent=5 // pred_fallthru
        _
    $region6: #{tpu_custom_call.1} parent=1 // loop_footer
      %s19 = sadd.s32 1, %s15
    $region7: #{tpu_custom_call.1} parent=1 // loop_footer_branch
      %14 = sbr.rel target = $region3
    $region8: #{tpu_custom_call.1} parent=1 // loop_exit
      _
    %745 = vsyncpa [#allocation3], 1
    %s746 = scalar_lea.sflag [#allocation3], 1
    %747 = vsyncpa %s746, 1
    %748 = vsyncpa [#allocation5], 1
    %s749 = scalar_lea.sflag [#allocation5], 1
    %750 = vsyncpa %s749, 1

</llo_original>
